<compile_context>
chip_gen: v7x
topology: tpu7x:2x2x1
jax: 0.10.0
libtpu: 0.0.40
codegen_flags: <defaults>
</compile_context>

<pallas_src>
import functools

import jax
import jax.numpy as jnp
from jax.experimental import pallas as pl
from jax.experimental.pallas import tpu as pltpu


# ----------------------------------------------------------------------------
# Fused kernel: conv1d + tanh -> attention pooling -> classifier + log_softmax
# Grid: one program per block of TB sequences.
# ----------------------------------------------------------------------------
def _repr_cls_kernel(emb_ref, mask_ref, cw_ref, cb_ref, aw_ref, ab_ref,
                     clsw_ref, clsb_ref,
                     z_ref, alpha_ref, probs_ref, *, tb, lr):
    # emb_ref:   (TB*Lr, E)   bf16/f32 token embeddings (flat batch*seq rows)
    # mask_ref:  (TB*Lr, 1)   f32, 1.0 for real tokens, 0.0 for pad
    # cw_ref:    (K, E, H)    conv weights (PyTorch (H, E, K) permuted)
    # cb_ref:    (1, H)       conv bias
    # aw_ref:    (1, H)       attention weight (Linear(H, 1).weight)
    # ab_ref:    (1, 1)       attention bias
    # clsw_ref:  (H, C)       classifier weight (transposed)
    # clsb_ref:  (1, C)       classifier bias
    # z_ref:     (TB, H)      pooled representation (lane-dense)
    # alpha_ref: (TB, Lr, 1)  attention weights (per-row layout; tiny)
    # probs_ref: (TB, C)      log-probabilities (lane-dense)
    K, E, H = cw_ref.shape
    pad = K // 2
    tbl = tb * lr

    # ---- Conv1d(E->H, kernel K, zero padding K//2) + bias + tanh -----------
    # out[b, l] = sum_k emb[b, l + k - pad] @ W[k]   (zero outside [0, Lr))
    # Each tap is one aligned matmul over the whole slab; the shift is applied
    # to the tap *output* with a cyclic sublane roll and rows that wrapped
    # across sequence boundaries are masked to zero (== the conv zero pad).
    x2 = emb_ref[...]                                         # (TB*Lr, E)
    l_pos = jax.lax.broadcasted_iota(jnp.int32, (tbl, 1), 0) % lr

    acc = jnp.zeros((tbl, H), jnp.float32)
    for k in range(K):                                        # K small & static
        y_k = jnp.dot(x2, cw_ref[k], preferred_element_type=jnp.float32)
        s = pad - k                                           # sequence shift
        if s != 0:
            y_k = pltpu.roll(y_k, shift=s % tbl, axis=0)      # XLU sublane roll
            if s > 0:
                valid = l_pos >= s
            else:
                valid = l_pos < (lr + s)
            y_k = jnp.where(valid, y_k, 0.0)
        acc = acc + y_k
    h = jnp.tanh(acc + cb_ref[...])                           # (TB*Lr, H) f32

    # ---- Attention pooling --------------------------------------------------
    # logit = h . w + b   (VPU multiply + XLU lane reduce, no 1-wide matmul)
    logit = jnp.sum(h * aw_ref[...], axis=-1, keepdims=True) + ab_ref[...]
    a = jnp.exp(logit) * mask_ref[...]                        # (TB*Lr, 1)

    a3 = a.reshape(tb, lr, 1)                                 # split batch/seq
    denom = jnp.sum(a3, axis=1, keepdims=True)                # (TB, 1, 1)
    inv = pl.reciprocal(denom, approx=True)                   # EUP reciprocal
    alpha3 = a3 * inv                                         # (TB, Lr, 1)
    alpha_ref[...] = alpha3

    h3 = h.reshape(tb, lr, H)                                 # (TB, Lr, H)
    z = jnp.sum(h3 * alpha3, axis=1)                          # (TB, H)
    z_ref[...] = z

    # ---- Classifier + log_softmax (z already resident in VMEM) -------------
    logits = jnp.dot(z, clsw_ref[...],
                     preferred_element_type=jnp.float32) + clsb_ref[...]
    m = jnp.max(logits, axis=-1, keepdims=True)
    lse = jnp.log(jnp.sum(jnp.exp(logits - m), axis=-1, keepdims=True)) + m
    probs_ref[...] = logits - lse                             # (TB, C)


# ----------------------------------------------------------------------------
# Python wrapper
# ----------------------------------------------------------------------------
def baseline_forward(x, y, params, pad_idx=0,
                     compute_dtype=jnp.bfloat16, block_b=None):
    """x: (B, L) int32 token ids, y: (B,) int32 labels (or None)."""
    emb_matrix = params["emb"]          # (V, E)
    conv_w = params["conv_w"]           # (K, E, H)
    conv_b = params["conv_b"]           # (1, H)
    attn_w = params["attn_w"]           # (1, H)
    attn_b = params["attn_b"]           # (1, 1)
    cls_w = params["cls_w"]             # (H, C)
    cls_b = params["cls_b"]             # (1, C)

    B, L = x.shape
    K, E, H = conv_w.shape
    C = cls_w.shape[1]

    # Sequence length rounded up to the sublane tile (8) so in-kernel
    # (TB*Lr, .) <-> (TB, Lr, .) reshapes are layout-trivial.  Extra rows get
    # zero embeddings (identical to the conv's zero padding) and mask 0.
    Lr = ((L + 7) // 8) * 8

    # Batch block: target TB*Lr >= 256 rows so the MXU M-dim is well filled;
    # when the batch is split, TB is a multiple of 8 (sublane tile) and the
    # grid has several steps (megacore-friendly on v7x).
    if block_b is None:
        tb_target = max(1, 256 // Lr)
        if B <= tb_target:
            block_b = B
        else:
            block_b = max(8, (tb_target // 8) * 8)
    TB = block_b
    nb = pl.cdiv(B, TB)
    Bp = nb * TB

    # Embedding gather (single HBM materialization; no separate padded copy —
    # conv boundaries are handled in-kernel).
    mask = (x != pad_idx).astype(jnp.float32)                  # (B, L)
    emb = emb_matrix.astype(compute_dtype)[x]                  # (B, L, E)
    if (Bp, Lr) != (B, L):
        emb = jnp.pad(emb, ((0, Bp - B), (0, Lr - L), (0, 0)))
        mask = jnp.pad(mask, ((0, Bp - B), (0, Lr - L)))
    emb2 = emb.reshape(Bp * Lr, E)                             # flat rows
    mask2 = mask.reshape(Bp * Lr, 1)

    kernel = functools.partial(_repr_cls_kernel, tb=TB, lr=Lr)
    z, alpha3, probs = pl.pallas_call(
        kernel,
        out_shape=(jax.ShapeDtypeStruct((Bp, H), jnp.float32),
                   jax.ShapeDtypeStruct((Bp, Lr, 1), jnp.float32),
                   jax.ShapeDtypeStruct((Bp, C), jnp.float32)),
        grid_spec=pltpu.PrefetchScalarGridSpec(
            num_scalar_prefetch=0,
            grid=(nb,),
            in_specs=[
                pl.BlockSpec((TB * Lr, E), lambda b: (b, 0)),      # embeddings
                pl.BlockSpec((TB * Lr, 1), lambda b: (b, 0)),      # pad mask
                pl.BlockSpec((K, E, H), lambda b: (0, 0, 0)),      # conv W
                pl.BlockSpec((1, H), lambda b: (0, 0)),            # conv b
                pl.BlockSpec((1, H), lambda b: (0, 0)),            # attn W
                pl.BlockSpec((1, 1), lambda b: (0, 0)),            # attn b
                pl.BlockSpec((H, C), lambda b: (0, 0)),            # cls W
                pl.BlockSpec((1, C), lambda b: (0, 0)),            # cls b
            ],
            out_specs=[
                pl.BlockSpec((TB, H), lambda b: (b, 0)),           # z
                pl.BlockSpec((TB, Lr, 1), lambda b: (b, 0, 0)),    # alpha
                pl.BlockSpec((TB, C), lambda b: (b, 0)),           # log-probs
            ],
        ),
        compiler_params=pltpu.CompilerParams(
            dimension_semantics=("parallel",)),
    )(emb2, mask2,
      conv_w.astype(compute_dtype), conv_b.astype(jnp.float32),
      attn_w.astype(jnp.float32), attn_b.astype(jnp.float32),
      cls_w.astype(jnp.float32), cls_b.astype(jnp.float32))

    z = z[:B]
    probs = probs[:B]
    alpha = alpha3[:B, :L, 0]                                  # (B, L)

    out = {"z": z, "probs": probs, "att": alpha}
    if y is not None:
        y2 = y.astype(jnp.int32).reshape(B, 1)
        # NLLLoss(size_average=False): -sum_i probs[i, y_i]
        total_loss = -jnp.sum(jnp.take_along_axis(probs, y2, axis=1))
        out["total_loss"] = total_loss
        out["loss"] = total_loss / B
    return out


if __name__ == "__main__":
    # Small shapes consistent with the module's forward.
    B, L = 2, 8           # batch, max_len
    V, E = 50, 32         # vocab_size, embedding_dim
    H, K, C = 32, 3, 4    # hidden_dim, kernel_size, n_classes
    pad_idx = 0

    key = jax.random.PRNGKey(0)
    keys = jax.random.split(key, 9)

    emb_matrix = jax.random.normal(keys[0], (V, E), jnp.float32) * 0.1
    emb_matrix = emb_matrix.at[pad_idx].set(0.0)   # padding_idx row zeroed
    params = {
        "emb": emb_matrix,
        # Conv1d weight (H, E, K) stored pre-permuted as (K, E, H).
        "conv_w": jax.random.normal(keys[1], (K, E, H), jnp.float32) * 0.1,
        "conv_b": jax.random.normal(keys[2], (1, H), jnp.float32) * 0.1,
        # Linear(H, 1): weight (1, H), bias -> (1, 1).
        "attn_w": jax.random.normal(keys[3], (1, H), jnp.float32) * 0.1,
        "attn_b": jax.random.normal(keys[4], (1, 1), jnp.float32) * 0.1,
        # Linear(H, C): weight (C, H) stored transposed as (H, C).
        "cls_w": jax.random.normal(keys[5], (H, C), jnp.float32) * 0.1,
        "cls_b": jax.random.normal(keys[6], (1, C), jnp.float32) * 0.1,
    }

    # Token ids (with some pad tokens at the end of the second sequence).
    x = jax.random.randint(keys[7], (B, L), 1, V).astype(jnp.int32)
    x = x.at[1, L - 3:].set(pad_idx)
    y = jax.random.randint(keys[8], (B,), 0, C).astype(jnp.int32)

    out = baseline_forward(x, y, params, pad_idx=pad_idx)
    jax.block_until_ready(out)

    assert out["z"].shape == (B, H)
    assert out["probs"].shape == (B, C)
    assert out["att"].shape == (B, L)
    assert out["loss"].shape == ()
    print("KERNEL_OK")
</pallas_src>

<mosaic_0001>
module attributes {stable_mosaic.version = 11 : i64} {
  func.func @_repr_cls_kernel(%arg0: i32, %arg1: memref<16x32xbf16, #tpu.memory_space<vmem>>, %arg2: memref<16x1xf32, #tpu.memory_space<vmem>>, %arg3: memref<3x32x32xbf16, #tpu.memory_space<vmem>>, %arg4: memref<1x32xf32, #tpu.memory_space<vmem>>, %arg5: memref<1x32xf32, #tpu.memory_space<vmem>>, %arg6: memref<1x1xf32, #tpu.memory_space<vmem>>, %arg7: memref<32x4xf32, #tpu.memory_space<vmem>>, %arg8: memref<1x4xf32, #tpu.memory_space<vmem>>, %arg9: memref<2x32xf32, #tpu.memory_space<vmem>>, %arg10: memref<2x8x1xf32, #tpu.memory_space<vmem>>, %arg11: memref<2x4xf32, #tpu.memory_space<vmem>>) attributes {dimension_semantics = [#tpu.dimension_semantics<parallel>], iteration_bounds = array<i64: 1>, scalar_prefetch = 0 : i64, scratch_operands = 0 : i64, tpu.core_type = #tpu.core_type<tc>, window_params = [{transform_indices = @transform_0, window_bounds = array<i64: 16, 32>}, {transform_indices = @transform_1, window_bounds = array<i64: 16, 1>}, {pipeline_mode = #tpu.pipeline_mode<synchronous>, transform_indices = @transform_2, window_bounds = array<i64: 3, 32, 32>}, {pipeline_mode = #tpu.pipeline_mode<synchronous>, transform_indices = @transform_3, window_bounds = array<i64: 1, 32>}, {pipeline_mode = #tpu.pipeline_mode<synchronous>, transform_indices = @transform_4, window_bounds = array<i64: 1, 32>}, {pipeline_mode = #tpu.pipeline_mode<synchronous>, transform_indices = @transform_5, window_bounds = array<i64: 1, 1>}, {pipeline_mode = #tpu.pipeline_mode<synchronous>, transform_indices = @transform_6, window_bounds = array<i64: 32, 4>}, {pipeline_mode = #tpu.pipeline_mode<synchronous>, transform_indices = @transform_7, window_bounds = array<i64: 1, 4>}, {transform_indices = @transform_8, window_bounds = array<i64: 2, 32>}, {transform_indices = @transform_9, window_bounds = array<i64: 2, 8, 1>}, {transform_indices = @transform_10, window_bounds = array<i64: 2, 4>}]} {
    %c0 = arith.constant 0 : index
    %c0_0 = arith.constant 0 : index
    %0 = vector.load %arg1[%c0, %c0_0] : memref<16x32xbf16, #tpu.memory_space<vmem>>, vector<16x32xbf16>
    %1 = tpu.iota {dimensions = array<i32: 0>} : vector<16x1xi32>
    %c8_i32 = arith.constant 8 : i32
    %c0_i32 = arith.constant 0 : i32
    %2 = arith.cmpi eq, %c8_i32, %c0_i32 : i32
    %c1_i32 = arith.constant 1 : i32
    %3 = arith.select %2, %c1_i32, %c8_i32 : i32
    %4 = vector.broadcast %3 : i32 to vector<16x1xi32>
    %5 = arith.remsi %1, %4 : vector<16x1xi32>
    %c0_i32_1 = arith.constant 0 : i32
    %6 = vector.broadcast %c0_i32_1 : i32 to vector<16x1xi32>
    %7 = arith.cmpi ne, %5, %6 : vector<16x1xi32>
    %c0_i32_2 = arith.constant 0 : i32
    %8 = vector.broadcast %c0_i32_2 : i32 to vector<16x1xi32>
    %9 = arith.cmpi slt, %5, %8 : vector<16x1xi32>
    %c0_i32_3 = arith.constant 0 : i32
    %10 = arith.cmpi slt, %3, %c0_i32_3 : i32
    %11 = vector.broadcast %10 : i1 to vector<16x1xi1>
    %12 = vector.broadcast %11 : vector<16x1xi1> to vector<16x1xi1>
    %13 = arith.xori %9, %12 : vector<16x1xi1>
    %14 = arith.andi %13, %7 : vector<16x1xi1>
    %15 = vector.broadcast %3 : i32 to vector<16x1xi32>
    %16 = arith.addi %5, %15 : vector<16x1xi32>
    %17 = arith.select %14, %16, %5 : vector<16x1xi1>, vector<16x1xi32>
    %cst = arith.constant 0.000000e+00 : f32
    %18 = vector.broadcast %cst : f32 to vector<16x32xf32>
    %c0_4 = arith.constant 0 : index
    %c0_5 = arith.constant 0 : index
    %c0_6 = arith.constant 0 : index
    %19 = vector.load %arg3[%c0_4, %c0_5, %c0_6] : memref<3x32x32xbf16, #tpu.memory_space<vmem>>, vector<1x32x32xbf16>
    %20 = vector.shape_cast %19 : vector<1x32x32xbf16> to vector<32x32xbf16>
    %cst_7 = arith.constant dense<0.000000e+00> : vector<16x32xf32>
    %21 = tpu.matmul %0, %20, %cst_7 {dimension_numbers = #tpu.dot_dimension_numbers<[1], [0], [0], [1], [0, 0, 1, 1], [], []>} : vector<16x32xbf16>, vector<32x32xbf16>, vector<16x32xf32> -> vector<16x32xf32>
    %c1_i32_8 = arith.constant 1 : i32
    %22 = tpu.dynamic_rotate %21 by %c1_i32_8 dim 0 : vector<16x32xf32>, i32 -> vector<16x32xf32>
    %c1_i32_9 = arith.constant 1 : i32
    %23 = vector.broadcast %c1_i32_9 : i32 to vector<16x1xi32>
    %24 = arith.cmpi sge, %17, %23 : vector<16x1xi32>
    %cst_10 = arith.constant 0.000000e+00 : f32
    %25 = vector.shape_cast %24 : vector<16x1xi1> to vector<16x1xi1>
    %26 = vector.broadcast %25 : vector<16x1xi1> to vector<16x32xi1>
    %27 = vector.broadcast %cst_10 : f32 to vector<16x32xf32>
    %28 = arith.select %26, %22, %27 : vector<16x32xi1>, vector<16x32xf32>
    %29 = arith.addf %18, %28 : vector<16x32xf32>
    %c1 = arith.constant 1 : index
    %c0_11 = arith.constant 0 : index
    %c0_12 = arith.constant 0 : index
    %30 = vector.load %arg3[%c1, %c0_11, %c0_12] : memref<3x32x32xbf16, #tpu.memory_space<vmem>>, vector<1x32x32xbf16>
    %31 = vector.shape_cast %30 : vector<1x32x32xbf16> to vector<32x32xbf16>
    %cst_13 = arith.constant dense<0.000000e+00> : vector<16x32xf32>
    %32 = tpu.matmul %0, %31, %cst_13 {dimension_numbers = #tpu.dot_dimension_numbers<[1], [0], [0], [1], [0, 0, 1, 1], [], []>} : vector<16x32xbf16>, vector<32x32xbf16>, vector<16x32xf32> -> vector<16x32xf32>
    %33 = arith.addf %29, %32 : vector<16x32xf32>
    %c2 = arith.constant 2 : index
    %c0_14 = arith.constant 0 : index
    %c0_15 = arith.constant 0 : index
    %34 = vector.load %arg3[%c2, %c0_14, %c0_15] : memref<3x32x32xbf16, #tpu.memory_space<vmem>>, vector<1x32x32xbf16>
    %35 = vector.shape_cast %34 : vector<1x32x32xbf16> to vector<32x32xbf16>
    %cst_16 = arith.constant dense<0.000000e+00> : vector<16x32xf32>
    %36 = tpu.matmul %0, %35, %cst_16 {dimension_numbers = #tpu.dot_dimension_numbers<[1], [0], [0], [1], [0, 0, 1, 1], [], []>} : vector<16x32xbf16>, vector<32x32xbf16>, vector<16x32xf32> -> vector<16x32xf32>
    %c15_i32 = arith.constant 15 : i32
    %37 = tpu.dynamic_rotate %36 by %c15_i32 dim 0 : vector<16x32xf32>, i32 -> vector<16x32xf32>
    %c7_i32 = arith.constant 7 : i32
    %38 = vector.broadcast %c7_i32 : i32 to vector<16x1xi32>
    %39 = arith.cmpi slt, %17, %38 : vector<16x1xi32>
    %cst_17 = arith.constant 0.000000e+00 : f32
    %40 = vector.shape_cast %39 : vector<16x1xi1> to vector<16x1xi1>
    %41 = vector.broadcast %40 : vector<16x1xi1> to vector<16x32xi1>
    %42 = vector.broadcast %cst_17 : f32 to vector<16x32xf32>
    %43 = arith.select %41, %37, %42 : vector<16x32xi1>, vector<16x32xf32>
    %44 = arith.addf %33, %43 : vector<16x32xf32>
    %c0_18 = arith.constant 0 : index
    %c0_19 = arith.constant 0 : index
    %45 = vector.load %arg4[%c0_18, %c0_19] : memref<1x32xf32, #tpu.memory_space<vmem>>, vector<1x32xf32>
    %46 = vector.broadcast %45 : vector<1x32xf32> to vector<16x32xf32>
    %47 = arith.addf %44, %46 : vector<16x32xf32>
    %48 = math.tanh %47 : vector<16x32xf32>
    %c0_20 = arith.constant 0 : index
    %c0_21 = arith.constant 0 : index
    %49 = vector.load %arg5[%c0_20, %c0_21] : memref<1x32xf32, #tpu.memory_space<vmem>>, vector<1x32xf32>
    %50 = vector.broadcast %49 : vector<1x32xf32> to vector<16x32xf32>
    %51 = arith.mulf %48, %50 : vector<16x32xf32>
    %cst_22 = arith.constant dense<0.000000e+00> : vector<16xf32>
    %52 = vector.multi_reduction <add>, %51, %cst_22 [1] : vector<16x32xf32> to vector<16xf32>
    %53 = vector.shape_cast %52 : vector<16xf32> to vector<16x1xf32>
    %c0_23 = arith.constant 0 : index
    %c0_24 = arith.constant 0 : index
    %54 = vector.load %arg6[%c0_23, %c0_24] : memref<1x1xf32, #tpu.memory_space<vmem>>, vector<1x1xf32>
    %55 = vector.broadcast %54 : vector<1x1xf32> to vector<16x1xf32>
    %56 = arith.addf %53, %55 : vector<16x1xf32>
    %57 = math.exp %56 : vector<16x1xf32>
    %c0_25 = arith.constant 0 : index
    %c0_26 = arith.constant 0 : index
    %58 = vector.load %arg2[%c0_25, %c0_26] : memref<16x1xf32, #tpu.memory_space<vmem>>, vector<16x1xf32>
    %59 = arith.mulf %57, %58 : vector<16x1xf32>
    %60 = vector.shape_cast %59 : vector<16x1xf32> to vector<2x8x1xf32>
    %cst_27 = arith.constant dense<0.000000e+00> : vector<2x1xf32>
    %61 = vector.multi_reduction <add>, %60, %cst_27 [1] : vector<2x8x1xf32> to vector<2x1xf32>
    %62 = vector.shape_cast %61 : vector<2x1xf32> to vector<2x1x1xf32>
    %63 = tpu.reciprocal %62 {approx = true} : vector<2x1x1xf32> -> vector<2x1x1xf32>
    %64 = vector.broadcast %63 : vector<2x1x1xf32> to vector<2x8x1xf32>
    %65 = arith.mulf %60, %64 : vector<2x8x1xf32>
    %c0_28 = arith.constant 0 : index
    %c0_29 = arith.constant 0 : index
    %c0_30 = arith.constant 0 : index
    %66 = vector.load %arg10[%c0_28, %c0_29, %c0_30] : memref<2x8x1xf32, #tpu.memory_space<vmem>>, vector<2x8x1xf32>
    tpu.vector_store %arg10[%c0_28, %c0_29, %c0_30], %65 {strides = array<i32>} : memref<2x8x1xf32, #tpu.memory_space<vmem>>, vector<2x8x1xf32>,
    %67 = vector.shape_cast %48 : vector<16x32xf32> to vector<2x8x32xf32>
    %68 = vector.broadcast %65 : vector<2x8x1xf32> to vector<2x8x32xf32>
    %69 = arith.mulf %67, %68 : vector<2x8x32xf32>
    %cst_31 = arith.constant dense<0.000000e+00> : vector<2x32xf32>
    %70 = vector.multi_reduction <add>, %69, %cst_31 [1] : vector<2x8x32xf32> to vector<2x32xf32>
    %c0_32 = arith.constant 0 : index
    %c0_33 = arith.constant 0 : index
    %71 = vector.load %arg9[%c0_32, %c0_33] : memref<2x32xf32, #tpu.memory_space<vmem>>, vector<2x32xf32>
    tpu.vector_store %arg9[%c0_32, %c0_33], %70 {strides = array<i32>} : memref<2x32xf32, #tpu.memory_space<vmem>>, vector<2x32xf32>,
    %c0_34 = arith.constant 0 : index
    %c0_35 = arith.constant 0 : index
    %72 = vector.load %arg7[%c0_34, %c0_35] : memref<32x4xf32, #tpu.memory_space<vmem>>, vector<32x4xf32>
    %cst_36 = arith.constant dense<0.000000e+00> : vector<2x4xf32>
    %73 = tpu.matmul %70, %72, %cst_36 {dimension_numbers = #tpu.dot_dimension_numbers<[1], [0], [0], [1], [0, 0, 1, 1], [], []>} : vector<2x32xf32>, vector<32x4xf32>, vector<2x4xf32> -> vector<2x4xf32>
    %c0_37 = arith.constant 0 : index
    %c0_38 = arith.constant 0 : index
    %74 = vector.load %arg8[%c0_37, %c0_38] : memref<1x4xf32, #tpu.memory_space<vmem>>, vector<1x4xf32>
    %75 = vector.broadcast %74 : vector<1x4xf32> to vector<2x4xf32>
    %76 = arith.addf %73, %75 : vector<2x4xf32>
    %cst_39 = arith.constant dense<0xFF800000> : vector<2xf32>
    %77 = vector.multi_reduction <maximumf>, %76, %cst_39 [1] : vector<2x4xf32> to vector<2xf32>
    %78 = vector.shape_cast %77 : vector<2xf32> to vector<2x1xf32>
    %79 = vector.broadcast %78 : vector<2x1xf32> to vector<2x4xf32>
    %80 = arith.subf %76, %79 : vector<2x4xf32>
    %81 = math.exp %80 : vector<2x4xf32>
    %cst_40 = arith.constant dense<0.000000e+00> : vector<2xf32>
    %82 = vector.multi_reduction <add>, %81, %cst_40 [1] : vector<2x4xf32> to vector<2xf32>
    %83 = vector.shape_cast %82 : vector<2xf32> to vector<2x1xf32>
    %84 = math.log %83 : vector<2x1xf32>
    %85 = arith.addf %84, %78 : vector<2x1xf32>
    %86 = vector.broadcast %85 : vector<2x1xf32> to vector<2x4xf32>
    %87 = arith.subf %76, %86 : vector<2x4xf32>
    %c0_41 = arith.constant 0 : index
    %c0_42 = arith.constant 0 : index
    %88 = vector.load %arg11[%c0_41, %c0_42] : memref<2x4xf32, #tpu.memory_space<vmem>>, vector<2x4xf32>
    tpu.vector_store %arg11[%c0_41, %c0_42], %87 {strides = array<i32>} : memref<2x4xf32, #tpu.memory_space<vmem>>, vector<2x4xf32>,
    return
  }
  func.func @transform_0(%arg0: i32) -> (i32, i32) {
    %c0_i32 = arith.constant 0 : i32
    %c0_i32_0 = arith.constant 0 : i32
    return %arg0, %c0_i32 : i32, i32
  }
  func.func @transform_1(%arg0: i32) -> (i32, i32) {
    %c0_i32 = arith.constant 0 : i32
    %c0_i32_0 = arith.constant 0 : i32
    return %arg0, %c0_i32 : i32, i32
  }
  func.func @transform_2(%arg0: i32) -> (i32, i32, i32) {
    %c0_i32 = arith.constant 0 : i32
    %c0_i32_0 = arith.constant 0 : i32
    %c0_i32_1 = arith.constant 0 : i32
    %c0_i32_2 = arith.constant 0 : i32
    return %c0_i32, %c0_i32_0, %c0_i32_1 : i32, i32, i32
  }
  func.func @transform_3(%arg0: i32) -> (i32, i32) {
    %c0_i32 = arith.constant 0 : i32
    %c0_i32_0 = arith.constant 0 : i32
    %c0_i32_1 = arith.constant 0 : i32
    return %c0_i32, %c0_i32_0 : i32, i32
  }
  func.func @transform_4(%arg0: i32) -> (i32, i32) {
    %c0_i32 = arith.constant 0 : i32
    %c0_i32_0 = arith.constant 0 : i32
    %c0_i32_1 = arith.constant 0 : i32
    return %c0_i32, %c0_i32_0 : i32, i32
  }
  func.func @transform_5(%arg0: i32) -> (i32, i32) {
    %c0_i32 = arith.constant 0 : i32
    %c0_i32_0 = arith.constant 0 : i32
    %c0_i32_1 = arith.constant 0 : i32
    return %c0_i32, %c0_i32_0 : i32, i32
  }
  func.func @transform_6(%arg0: i32) -> (i32, i32) {
    %c0_i32 = arith.constant 0 : i32
    %c0_i32_0 = arith.constant 0 : i32
    %c0_i32_1 = arith.constant 0 : i32
    return %c0_i32, %c0_i32_0 : i32, i32
  }
  func.func @transform_7(%arg0: i32) -> (i32, i32) {
    %c0_i32 = arith.constant 0 : i32
    %c0_i32_0 = arith.constant 0 : i32
    %c0_i32_1 = arith.constant 0 : i32
    return %c0_i32, %c0_i32_0 : i32, i32
  }
  func.func @transform_8(%arg0: i32) -> (i32, i32) {
    %c0_i32 = arith.constant 0 : i32
    %c0_i32_0 = arith.constant 0 : i32
    return %arg0, %c0_i32 : i32, i32
  }
  func.func @transform_9(%arg0: i32) -> (i32, i32, i32) {
    %c0_i32 = arith.constant 0 : i32
    %c0_i32_0 = arith.constant 0 : i32
    %c0_i32_1 = arith.constant 0 : i32
    return %arg0, %c0_i32, %c0_i32_0 : i32, i32, i32
  }
  func.func @transform_10(%arg0: i32) -> (i32, i32) {
    %c0_i32 = arith.constant 0 : i32
    %c0_i32_0 = arith.constant 0 : i32
    return %arg0, %c0_i32 : i32, i32
  }
}

</mosaic_0001>

<llo_original>
// kernel: tpu_custom_call.1
$region0: #{tpu_custom_call.1}
  #allocation0 [shape = 'u32[]', space=smem, size = 0x4, offset = 0x4, fixed_abs, tag = 'smem constant byte address 0x4 - core index']
  #allocation1 [shape = 'u32[144,128]{1,0:T(1,128)}', space=vmem, size = 0x12000, scoped, tag = 'internal scratch']
  #allocation2 [shape = 'f32[1,1]{1,0:T(1,128)S(1)}', space=vmem, size = 0x200, scoped, tag = 'scoped memory for tpu_custom_call.1']
  %s0 = inlined_call_operand.vmem [shape: bf16[16,32], index: 0, kind: input, shape index: {}]
  %s1 = inlined_call_operand.vmem [shape: f32[16,1], index: 1, kind: input, shape index: {}]
  %s2 = inlined_call_operand.vmem [shape: bf16[3,32,32], index: 2, kind: input, shape index: {}]
  %s3 = inlined_call_operand.vmem [shape: f32[1,32], index: 3, kind: input, shape index: {}]
  %s4 = inlined_call_operand.vmem [shape: f32[1,32], index: 4, kind: input, shape index: {}]
  %s5 = inlined_call_operand.<no memory space> [shape: f32[1,1], index: 5, kind: input, shape index: {}]
  %s6 = inlined_call_operand.vmem [shape: f32[32,4], index: 6, kind: input, shape index: {}]
  %s7 = inlined_call_operand.vmem [shape: f32[1,4], index: 7, kind: input, shape index: {}]
  %s8 = inlined_call_operand.hbm [shape: f32[2,32], index: 8, kind: output, shape index: {0}]
  %s9 = inlined_call_operand.vmem [shape: f32[2,8,1], index: 9, kind: output, shape index: {1}]
  %s10 = inlined_call_operand.hbm [shape: f32[2,4], index: 10, kind: output, shape index: {2}]
  %11 = xla_tuple %s8, %s9, %s10
  %s12 = sld [smem:[#allocation0]]
  $region58: #{tpu_custom_call.1} parent=0
    _
  %s14 = ssub.s32 1, %s12
  %s15 = scalar_select 0, %s14, %s12
  %v16 = vstv %s5
  %17 = vst [vmem:[#allocation2] sm:$0x1] %v16
  $region1: #{tpu_custom_call.1} parent=0
    #allocation3 [shape = 'u8[1024]{0}', space=vmem, size = 0x400, scoped, tag = 'output window, operand 0, single buffered']
    #allocation4 [shape = 's32[1]{0}', space=sflag, size = 0x4, scoped, tag = 'scoped memory for tpu_custom_call.1']
    #allocation5 [shape = 'u8[1024]{0}', space=vmem, size = 0x400, scoped, tag = 'output window, operand 2, single buffered']
    #allocation6 [shape = 's32[1]{0}', space=sflag, size = 0x4, scoped, tag = 'scoped memory for tpu_custom_call.1']
    %18 = vsyncpa [#allocation4], 0
    %19 = vsyncpa [#allocation6], 0
    // Predicated region
    $region2: #{tpu_custom_call.1} parent=1 // pred_check
      _
    $region3: #{tpu_custom_call.1} parent=1 // pred_check_branch
      %21 = sbr.rel (0) target = $region5
    $region4: #{tpu_custom_call.1} parent=1 // pred_region
      _
    $region5: #{tpu_custom_call.1} parent=1 // pred_fallthru
      _
    // Predicated region
    $region6: #{tpu_custom_call.1} parent=1 // pred_check
      _
    $region7: #{tpu_custom_call.1} parent=1 // pred_check_branch
      %23 = sbr.rel (0) target = $region9
    $region8: #{tpu_custom_call.1} parent=1 // pred_region
      _
    $region9: #{tpu_custom_call.1} parent=1 // pred_fallthru
      _
    // Predicated region
    $region10: #{tpu_custom_call.1} parent=1 // pred_check
      _
    $region11: #{tpu_custom_call.1} parent=1 // pred_check_branch
      %25 = sbr.rel (0) target = $region13
    $region12: #{tpu_custom_call.1} parent=1 // pred_region
      _
    $region13: #{tpu_custom_call.1} parent=1 // pred_fallthru
      _
    // Predicated region
    $region14: #{tpu_custom_call.1} parent=1 // pred_check
      _
    $region15: #{tpu_custom_call.1} parent=1 // pred_check_branch
      %27 = sbr.rel (0) target = $region17
    $region16: #{tpu_custom_call.1} parent=1 // pred_region
      _
    $region17: #{tpu_custom_call.1} parent=1 // pred_fallthru
      _
    // Predicated region
    $region18: #{tpu_custom_call.1} parent=1 // pred_check
      _
    $region19: #{tpu_custom_call.1} parent=1 // pred_check_branch
      %29 = sbr.rel (0) target = $region21
    $region20: #{tpu_custom_call.1} parent=1 // pred_region
      _
    $region21: #{tpu_custom_call.1} parent=1 // pred_fallthru
      _
    // Predicated region
    $region22: #{tpu_custom_call.1} parent=1 // pred_check
      _
    $region23: #{tpu_custom_call.1} parent=1 // pred_check_branch
      %31 = sbr.rel (0) target = $region25
    $region24: #{tpu_custom_call.1} parent=1 // pred_region
      _
    $region25: #{tpu_custom_call.1} parent=1 // pred_fallthru
      _
    // Predicated region
    $region26: #{tpu_custom_call.1} parent=1 // pred_check
      _
    $region27: #{tpu_custom_call.1} parent=1 // pred_check_branch
      %33 = sbr.rel (0) target = $region29
    $region28: #{tpu_custom_call.1} parent=1 // pred_region
      _
    $region29: #{tpu_custom_call.1} parent=1 // pred_fallthru
      _
    // Predicated region
    $region30: #{tpu_custom_call.1} parent=1 // pred_check
      _
    $region31: #{tpu_custom_call.1} parent=1 // pred_check_branch
      %35 = sbr.rel (0) target = $region33
    $region32: #{tpu_custom_call.1} parent=1 // pred_region
      _
    $region33: #{tpu_custom_call.1} parent=1 // pred_fallthru
      _
    %v37 = vld [vmem:[%s0] sm:$0xf]
    %v38 = vld [vmem:[%s0 + $0x4] sm:$0xf]
    %v39 = vlaneseq
    %v40 = vshrl.u32 %v39, 7
    %v41 = vadd.s32 %v40, 8
    %vm42 = vcmp.lt.s32.totalorder %v40, 0
    %v43 = vsub.s32 0, %v40
    %v44 = vsel %vm42, %v43, %v40
    %v45 = vshrl.u32 %v44, 3
    %v46 = vand.u32 %v44, 7
    %v47 = vsub.s32 0, %v46
    %v48 = vsel %vm42, %v47, %v46
    %vm49 = vcmp.lt.s32.totalorder %v41, 0
    %v50 = vsub.s32 0, %v41
    %v51 = vsel %vm49, %v50, %v41
    %v52 = vshrl.u32 %v51, 3
    %v53 = vand.u32 %v51, 7
    %v54 = vsub.s32 0, %v53
    %v55 = vsel %vm49, %v54, %v53
    %vm56 = vcmp.ne.s32.totalorder %v48, 0
    %vm57 = vcmp.ne.s32.totalorder %v55, 0
    %vm58 = vcmp.lt.s32.totalorder %v48, 0
    %vm59 = vcmp.lt.s32.totalorder %v55, 0
    %vm60 = vmand %vm58, %vm56
    %vm61 = vmand %vm59, %vm57
    %v62 = vadd.s32 %v48, 8
    %v63 = vadd.s32 %v55, 8
    %v64 = vsel %vm60, %v62, %v48
    %v65 = vsel %vm61, %v63, %v55
    %v66 = vld [vmem:[%s2] sm:$0xf]
    %v67 = vld [vmem:[%s2 + $0x4] sm:$0xf]
    %v68 = vld [vmem:[%s2 + $0x8] sm:$0xf]
    %v69 = vld [vmem:[%s2 + $0xc] sm:$0xf]
    %v72 = vunpack.c.l.b16 %v37
    %v73 = vunpack.c.l.b16 %v38
    %v74 = vpack.c.b16 %v73, %v72
    %v79 = vunpack.c.l.b16 %v66
    %v80 = vunpack.c.l.b16 %v67
    %v81 = vunpack.c.l.b16 %v68
    %v82 = vunpack.c.l.b16 %v69
    %v83 = vpack.c.b16 %v80, %v79
    %v84 = vpack.c.b16 %v82, %v81
    %vm87 = vcmask 261120
    %v89 = vsel %vm87, %v74, 0
    %91 = vmatprep.subr.bf16.mxu0 0
    %92 = vmatpush1.bf16.msra.mxu0 %v83
    %93 = vmatprep.subr.bf16.mxu0 0
    %94 = vmatpush1.bf16.msra.mxu0 %v84
    %95 = vmatprep.subr.bf16.mxu0 0
    %96 = vmatpush1.bf16.msra.mxu0 0
    %97 = vmatprep.subr.bf16.mxu0 0
    %98 = vmatpush1.bf16.msra.mxu0 0
    %99 = vmatprep.subr.bf16.mxu0 0
    %100 = vmatpush1.bf16.msra.mxu0 0
    %101 = vmatprep.subr.bf16.mxu0 0
    %102 = vmatpush1.bf16.msra.mxu0 0
    %103 = vmatprep.subr.bf16.mxu0 0
    %104 = vmatpush1.bf16.msra.mxu0 0
    %105 = vmatprep.subr.bf16.mxu0 0
    %106 = vmatpush1.bf16.msra.mxu0 0
    %107 = vmatprep.subr.bf16.mxu0 0
    %108 = vmatpush1.bf16.msra.mxu0 0
    %109 = vmatprep.subr.bf16.mxu0 0
    %110 = vmatpush1.bf16.msra.mxu0 0
    %111 = vmatprep.subr.bf16.mxu0 0
    %112 = vmatpush1.bf16.msra.mxu0 0
    %113 = vmatprep.subr.bf16.mxu0 0
    %114 = vmatpush1.bf16.msra.mxu0 0
    %115 = vmatprep.subr.bf16.mxu0 0
    %116 = vmatpush1.bf16.msra.mxu0 0
    %117 = vmatprep.subr.bf16.mxu0 0
    %118 = vmatpush1.bf16.msra.mxu0 0
    %119 = vmatprep.subr.bf16.mxu0 0
    %120 = vmatpush1.bf16.msra.mxu0 0
    %121 = vmatprep.subr.bf16.mxu0 0
    %122 = vmatpush1.bf16.msra.mxu0 0
    %123 = vmatprep.mubr.bf16.mxu0 0
    %124 = vmatmul.mubr.bf16.gmra.mrb[0].mxu0 %v89
    %v125 = vpop.f32.mrb[0].mxu0
    %v126 = vadd.f32 0.0, %v125
    %v127 = vpop.f32.mrb[0].mxu0
    %v128 = vpop.f32.mrb[0].mxu0
    %v129 = vadd.f32 0.0, %v128
    %v130 = vpop.f32.mrb[0].mxu0
    %131 = vdwg.mxu0
    %v132 = vrot.slane %v126, 7
    %v133 = vrot.slane %v129, 7
    %vm134 = vcmp.lt.s32.totalorder %v40, 1
    %v135 = vsel %vm134, %v132, %v133
    %v136 = vsel %vm134, %v133, %v132
    %vm137 = vcmp.ge.s32.totalorder %v64, 1
    %vm138 = vcmp.ge.s32.totalorder %v65, 1
    %v139 = vsel %vm137, 1, 0
    %v140 = vsel %vm138, 1, 0
    %vm141 = vcmp.eq.s32.totalorder %v139, 1
    %vm142 = vcmp.eq.s32.totalorder %v140, 1
    %v143 = vsel %vm141, %v136, 0.0
    %v144 = vsel %vm142, %v135, 0.0
    %v145 = vadd.f32 %v143, 0.0
    %v146 = vadd.f32 %v144, 0.0
    %s147 = scalar_lea.vmem %s2, 16
    %v148 = vld [vmem:[%s147] sm:$0xf]
    %v149 = vld [vmem:[%s147 + $0x4] sm:$0xf]
    %v150 = vld [vmem:[%s147 + $0x8] sm:$0xf]
    %v151 = vld [vmem:[%s147 + $0xc] sm:$0xf]
    %v156 = vunpack.c.l.b16 %v148
    %v157 = vunpack.c.l.b16 %v149
    %v158 = vunpack.c.l.b16 %v150
    %v159 = vunpack.c.l.b16 %v151
    %v160 = vpack.c.b16 %v157, %v156
    %v161 = vpack.c.b16 %v159, %v158
    %164 = vmatprep.subr.bf16.mxu0 0
    %165 = vmatpush1.bf16.msra.mxu0 %v160
    %166 = vmatprep.subr.bf16.mxu0 0
    %167 = vmatpush1.bf16.msra.mxu0 %v161
    %168 = vmatprep.subr.bf16.mxu0 0
    %169 = vmatpush1.bf16.msra.mxu0 0
    %170 = vmatprep.subr.bf16.mxu0 0
    %171 = vmatpush1.bf16.msra.mxu0 0
    %172 = vmatprep.subr.bf16.mxu0 0
    %173 = vmatpush1.bf16.msra.mxu0 0
    %174 = vmatprep.subr.bf16.mxu0 0
    %175 = vmatpush1.bf16.msra.mxu0 0
    %176 = vmatprep.subr.bf16.mxu0 0
    %177 = vmatpush1.bf16.msra.mxu0 0
    %178 = vmatprep.subr.bf16.mxu0 0
    %179 = vmatpush1.bf16.msra.mxu0 0
    %180 = vmatprep.subr.bf16.mxu0 0
    %181 = vmatpush1.bf16.msra.mxu0 0
    %182 = vmatprep.subr.bf16.mxu0 0
    %183 = vmatpush1.bf16.msra.mxu0 0
    %184 = vmatprep.subr.bf16.mxu0 0
    %185 = vmatpush1.bf16.msra.mxu0 0
    %186 = vmatprep.subr.bf16.mxu0 0
    %187 = vmatpush1.bf16.msra.mxu0 0
    %188 = vmatprep.subr.bf16.mxu0 0
    %189 = vmatpush1.bf16.msra.mxu0 0
    %190 = vmatprep.subr.bf16.mxu0 0
    %191 = vmatpush1.bf16.msra.mxu0 0
    %192 = vmatprep.subr.bf16.mxu0 0
    %193 = vmatpush1.bf16.msra.mxu0 0
    %194 = vmatprep.subr.bf16.mxu0 0
    %195 = vmatpush1.bf16.msra.mxu0 0
    %196 = vmatprep.mubr.bf16.mxu0 0
    %197 = vmatmul.mubr.bf16.gmra.mrb[0].mxu0 %v89
    %v198 = vpop.f32.mrb[0].mxu0
    %v199 = vadd.f32 0.0, %v198
    %v200 = vpop.f32.mrb[0].mxu0
    %v201 = vpop.f32.mrb[0].mxu0
    %v202 = vadd.f32 0.0, %v201
    %v203 = vpop.f32.mrb[0].mxu0
    %204 = vdwg.mxu0
    %v205 = vadd.f32 %v145, %v199
    %v206 = vadd.f32 %v146, %v202
    %s207 = scalar_lea.vmem %s2, 32
    %v208 = vld [vmem:[%s207] sm:$0xf]
    %v209 = vld [vmem:[%s207 + $0x4] sm:$0xf]
    %v210 = vld [vmem:[%s207 + $0x8] sm:$0xf]
    %v211 = vld [vmem:[%s207 + $0xc] sm:$0xf]
    %v216 = vunpack.c.l.b16 %v208
    %v217 = vunpack.c.l.b16 %v209
    %v218 = vunpack.c.l.b16 %v210
    %v219 = vunpack.c.l.b16 %v211
    %v220 = vpack.c.b16 %v217, %v216
    %v221 = vpack.c.b16 %v219, %v218
    %224 = vmatprep.subr.bf16.mxu0 0
    %225 = vmatpush1.bf16.msra.mxu0 %v220
    %226 = vmatprep.subr.bf16.mxu0 0
    %227 = vmatpush1.bf16.msra.mxu0 %v221
    %228 = vmatprep.subr.bf16.mxu0 0
    %229 = vmatpush1.bf16.msra.mxu0 0
    %230 = vmatprep.subr.bf16.mxu0 0
    %231 = vmatpush1.bf16.msra.mxu0 0
    %232 = vmatprep.subr.bf16.mxu0 0
    %233 = vmatpush1.bf16.msra.mxu0 0
    %234 = vmatprep.subr.bf16.mxu0 0
    %235 = vmatpush1.bf16.msra.mxu0 0
    %236 = vmatprep.subr.bf16.mxu0 0
    %237 = vmatpush1.bf16.msra.mxu0 0
    %238 = vmatprep.subr.bf16.mxu0 0
    %239 = vmatpush1.bf16.msra.mxu0 0
    %240 = vmatprep.subr.bf16.mxu0 0
    %241 = vmatpush1.bf16.msra.mxu0 0
    %242 = vmatprep.subr.bf16.mxu0 0
    %243 = vmatpush1.bf16.msra.mxu0 0
    %244 = vmatprep.subr.bf16.mxu0 0
    %245 = vmatpush1.bf16.msra.mxu0 0
    %246 = vmatprep.subr.bf16.mxu0 0
    %247 = vmatpush1.bf16.msra.mxu0 0
    %248 = vmatprep.subr.bf16.mxu0 0
    %249 = vmatpush1.bf16.msra.mxu0 0
    %250 = vmatprep.subr.bf16.mxu0 0
    %251 = vmatpush1.bf16.msra.mxu0 0
    %252 = vmatprep.subr.bf16.mxu0 0
    %253 = vmatpush1.bf16.msra.mxu0 0
    %254 = vmatprep.subr.bf16.mxu0 0
    %255 = vmatpush1.bf16.msra.mxu0 0
    %256 = vmatprep.mubr.bf16.mxu0 0
    %257 = vmatmul.mubr.bf16.gmra.mrb[0].mxu0 %v89
    %v258 = vpop.f32.mrb[0].mxu0
    %v259 = vadd.f32 0.0, %v258
    %v260 = vpop.f32.mrb[0].mxu0
    %v261 = vpop.f32.mrb[0].mxu0
    %v262 = vadd.f32 0.0, %v261
    %v263 = vpop.f32.mrb[0].mxu0
    %264 = vdwg.mxu0
    %v265 = vrot.slane %v259, 1
    %v266 = vrot.slane %v262, 1
    %vm267 = vcmp.lt.s32.totalorder %v40, 7
    %v268 = vsel %vm267, %v265, %v266
    %v269 = vsel %vm267, %v266, %v265
    %vm270 = vcmp.lt.s32.totalorder %v64, 7
    %vm271 = vcmp.lt.s32.totalorder %v65, 7
    %v272 = vsel %vm270, 1, 0
    %v273 = vsel %vm271, 1, 0
    %vm274 = vcmp.eq.s32.totalorder %v272, 1
    %vm275 = vcmp.eq.s32.totalorder %v273, 1
    %v276 = vsel %vm274, %v268, 0.0
    %v277 = vsel %vm275, %v269, 0.0
    %v278 = vadd.f32 %v205, %v276
    %v279 = vadd.f32 %v206, %v277
    %v280 = vld [vmem:[%s3] sm:$0x1]
    %v282 = vlaneseq
    %v283 = vshrl.u32 %v282, 7
    %v284 = vsub.s32 0, %v283
    %v285 = vrot.slane %v280, %v284
    %v287 = vadd.f32 %v278, %v285
    %v288 = vadd.f32 %v279, %v285
    %v289 = vtanh.pop %v287
    %v290 = vtanh.pop %v288
    %v291 = vld [vmem:[%s4] sm:$0x1]
    %v293 = vlaneseq
    %v294 = vshrl.u32 %v293, 7
    %v295 = vsub.s32 0, %v294
    %v296 = vrot.slane %v291, %v295
    %v298 = vmul.f32 %v289, %v296
    %v299 = vmul.f32 %v290, %v296
    %v300 = vsel %vm87, %v298, 0.0
    %301 = vadd.xlane.f32.xlu0 %v300
    %v302 = vpop.xlane.xlu0 %301
    %v303 = vsel %vm87, %v299, 0.0
    %304 = vadd.xlane.f32.xlu0 %v303
    %v305 = vpop.xlane.xlu0 %304
    %v306 = vld [vmem:[#allocation2] sm:$0x1]
    %v308 = vlaneseq
    %v309 = vshrl.u32 %v308, 7
    %v310 = vsub.s32 0, %v309
    %v311 = vrot.slane %v306, %v310
    %v313 = vadd.f32 %v302, %v311
    %v314 = vadd.f32 %v305, %v311
    %v315 = vmul.f32 %v313, 1.442695
    %v316 = vpow.pop %v315
    %v317 = vmul.f32 %v314, 1.442695
    %v318 = vpow.pop %v317
    %v319 = vld [vmem:[%s1] sm:$0xff]
    %v320 = vld [vmem:[%s1 + $0x8] sm:$0xff]
    %v321 = vmul.f32 %v316, %v319
    %v322 = vmul.f32 %v318, %v320
    %vm323 = vcmask 7168
    %v324 = vsel %vm323, %v321, 0.0
    %v325 = vrot.slane %v324, 4
    %v326 = vadd.f32 %v324, %v325
    %v327 = vrot.slane %v326, 2
    %v328 = vadd.f32 %v326, %v327
    %v329 = vrot.slane %v328, 1
    %v330 = vadd.f32 %v328, %v329
    %v331 = vsel %vm323, %v322, 0.0
    %v332 = vrot.slane %v331, 4
    %v333 = vadd.f32 %v331, %v332
    %v334 = vrot.slane %v333, 2
    %v335 = vadd.f32 %v333, %v334
    %v336 = vrot.slane %v335, 1
    %v337 = vadd.f32 %v335, %v336
    %v338 = vrcp.pop %v330
    %v339 = vrcp.pop %v337
    %v340 = vmul.f32 %v321, %v338
    %v341 = vmul.f32 %v322, %v339
    %342 = vst.msk [vmem:[%s9] sm:$0xff] %vm323, %v340
    %343 = vst.msk [vmem:[%s9 + $0x8] sm:$0xff] %vm323, %v341
    %345 = vset.pattern.permute.xlu0 0
    %346 = vperm.xlu0 %345, %v340
    %v347 = vpop.permute.xlu0 %346
    %350 = vset.pattern.permute.xlu0 0
    %351 = vperm.xlu0 %350, %v341
    %v352 = vpop.permute.xlu0 %351
    %v354 = vmul.f32 %v289, %v347
    %v355 = vmul.f32 %v290, %v352
    %v356 = vsel %vm87, %v354, 0.0
    %v357 = vrot.slane %v356, 4
    %v358 = vadd.f32 %v356, %v357
    %v359 = vrot.slane %v358, 2
    %v360 = vadd.f32 %v358, %v359
    %v361 = vrot.slane %v360, 1
    %v362 = vadd.f32 %v360, %v361
    %v363 = vsel %vm87, %v355, 0.0
    %v364 = vrot.slane %v363, 4
    %v365 = vadd.f32 %v363, %v364
    %v366 = vrot.slane %v365, 2
    %v367 = vadd.f32 %v365, %v366
    %v368 = vrot.slane %v367, 1
    %v369 = vadd.f32 %v367, %v368
    %vm372 = vcmask 1041409
    %v373 = vsel %vm372, %v369, %v362
    %vm375 = vcmask 254976
    %376 = vst.msk [vmem:[#allocation3] sm:$0x3] %vm375, %v373
    %v377 = vld [vmem:[%s6] sm:$0xff]
    %v378 = vld [vmem:[%s6 + $0x8] sm:$0xff]
    %v379 = vld [vmem:[%s6 + $0x10] sm:$0xff]
    %v380 = vld [vmem:[%s6 + $0x18] sm:$0xff]
    %v381 = vld [vmem:[%s7] sm:$0x1]
    %v383 = vlaneseq
    %v384 = vshrl.u32 %v383, 7
    %v385 = vsub.s32 0, %v384
    %v386 = vrot.slane %v381, %v385
    %v388 = vsel %vm87, %v373, 0
    %390 = vmatprep.subr.mxu0 0.0
    %391 = vmatpush1.msra.mxu0 %v377
    %392 = vmatprep.subr.mxu0 0.0
    %393 = vmatpush1.msra.mxu0 %v378
    %394 = vmatprep.subr.mxu0 0.0
    %395 = vmatpush1.msra.mxu0 %v379
    %396 = vmatprep.subr.mxu0 0.0
    %397 = vmatpush1.msra.mxu0 %v380
    %398 = vmatprep.subr.mxu0 0.0
    %399 = vmatpush1.msra.mxu0 0.0
    %400 = vmatprep.subr.mxu0 0.0
    %401 = vmatpush1.msra.mxu0 0.0
    %402 = vmatprep.subr.mxu0 0.0
    %403 = vmatpush1.msra.mxu0 0.0
    %404 = vmatprep.subr.mxu0 0.0
    %405 = vmatpush1.msra.mxu0 0.0
    %406 = vmatprep.subr.mxu0 0.0
    %407 = vmatpush1.msra.mxu0 0.0
    %408 = vmatprep.subr.mxu0 0.0
    %409 = vmatpush1.msra.mxu0 0.0
    %410 = vmatprep.subr.mxu0 0.0
    %411 = vmatpush1.msra.mxu0 0.0
    %412 = vmatprep.subr.mxu0 0.0
    %413 = vmatpush1.msra.mxu0 0.0
    %414 = vmatprep.subr.mxu0 0.0
    %415 = vmatpush1.msra.mxu0 0.0
    %416 = vmatprep.subr.mxu0 0.0
    %417 = vmatpush1.msra.mxu0 0.0
    %418 = vmatprep.subr.mxu0 0.0
    %419 = vmatpush1.msra.mxu0 0.0
    %420 = vmatprep.subr.mxu0 0.0
    %421 = vmatpush1.msra.mxu0 0.0
    %422 = vmatprep.subr.mxu0 0.0
    %423 = vmatpush1.msra.mxu0 0.0
    %424 = vmatprep.subr.mxu0 0.0
    %425 = vmatpush1.msra.mxu0 0.0
    %426 = vmatprep.subr.mxu0 0.0
    %427 = vmatpush1.msra.mxu0 0.0
    %428 = vmatprep.subr.mxu0 0.0
    %429 = vmatpush1.msra.mxu0 0.0
    %430 = vmatprep.subr.mxu0 0.0
    %431 = vmatpush1.msra.mxu0 0.0
    %432 = vmatprep.subr.mxu0 0.0
    %433 = vmatpush1.msra.mxu0 0.0
    %434 = vmatprep.subr.mxu0 0.0
    %435 = vmatpush1.msra.mxu0 0.0
    %436 = vmatprep.subr.mxu0 0.0
    %437 = vmatpush1.msra.mxu0 0.0
    %438 = vmatprep.subr.mxu0 0.0
    %439 = vmatpush1.msra.mxu0 0.0
    %440 = vmatprep.subr.mxu0 0.0
    %441 = vmatpush1.msra.mxu0 0.0
    %442 = vmatprep.subr.mxu0 0.0
    %443 = vmatpush1.msra.mxu0 0.0
    %444 = vmatprep.subr.mxu0 0.0
    %445 = vmatpush1.msra.mxu0 0.0
    %446 = vmatprep.subr.mxu0 0.0
    %447 = vmatpush1.msra.mxu0 0.0
    %448 = vmatprep.subr.mxu0 0.0
    %449 = vmatpush1.msra.mxu0 0.0
    %450 = vmatprep.subr.mxu0 0.0
    %451 = vmatpush1.msra.mxu0 0.0
    %452 = vmatprep.subr.mxu0 0.0
    %453 = vmatpush1.msra.mxu0 0.0
    %454 = vmatprep.mubr.f32.mxu0 0.0
    %455 = vmatmul.mubr.f32.gmra.mrb[0].mxu0 %v388
    %v456 = vpop.f32.mrb[0].mxu0
    %v457 = vadd.f32 %v386, %v456
    %v458 = vpop.f32.mrb[0].mxu0
    %459 = vdwg.mxu0
    %vm460 = vcmask 25600
    %v461 = vsel %vm460, %v457, -inf
    %462 = vmax.xlane.f32.xlu0 %v461
    %v463 = vpop.xlane.xlu0 %462
    %v464 = vsub.f32 %v457, %v463
    %v465 = vmul.f32 %v464, 1.442695
    %v466 = vpow.pop %v465
    %v467 = vsel %vm460, %v466, 0.0
    %468 = vadd.xlane.f32.xlu0 %v467
    %v469 = vpop.xlane.xlu0 %468
    %v470 = vlog2.pop %v469
    %v471 = vmul.f32 %v470, 0.6931472
    %v472 = vadd.f32 %v471, %v463
    %v473 = vsub.f32 %v457, %v472
    %474 = vst.msk [vmem:[#allocation5] sm:$0x3] %vm460, %v473
    // Predicated region
    $region34: #{tpu_custom_call.1} parent=1 // pred_check
      _
    $region35: #{tpu_custom_call.1} parent=1 // pred_check_branch
      %476 = sbr.rel (0) target = $region37
    $region36: #{tpu_custom_call.1} parent=1 // pred_region
      %s478 = ssub.s32 32, 32
      %479 = vsyncadd [#allocation4], %s478
      %s481 = sshll.u32 [#allocation3], 4
      %s482 = int_to_ptr.vmem [resolvable:$true] %s481
      %484 = dma.vmem_to_hbm [thread:$0]  %s482, 32, %s8, [#allocation4]
    $region37: #{tpu_custom_call.1} parent=1 // pred_fallthru
      _
    // Predicated region
    $region38: #{tpu_custom_call.1} parent=1 // pred_check
      _
    $region39: #{tpu_custom_call.1} parent=1 // pred_check_branch
      %486 = sbr.rel (0) target = $region41
    $region40: #{tpu_custom_call.1} parent=1 // pred_region
      _
    $region41: #{tpu_custom_call.1} parent=1 // pred_fallthru
      _
    // Predicated region
    $region42: #{tpu_custom_call.1} parent=1 // pred_check
      _
    $region43: #{tpu_custom_call.1} parent=1 // pred_check_branch
      %488 = sbr.rel (0) target = $region45
    $region44: #{tpu_custom_call.1} parent=1 // pred_region
      %s490 = ssub.s32 32, 32
      %491 = vsyncadd [#allocation6], %s490
      %s493 = sshll.u32 [#allocation5], 4
      %s494 = int_to_ptr.vmem [resolvable:$true] %s493
      %496 = dma.vmem_to_hbm [thread:$0]  %s494, 32, %s10, [#allocation6]
    $region45: #{tpu_custom_call.1} parent=1 // pred_fallthru
      _
    // Predicated region
    $region46: #{tpu_custom_call.1} parent=1 // pred_check
      _
    $region47: #{tpu_custom_call.1} parent=1 // pred_check_branch
      %498 = sbr.rel (0) target = $region49
    $region48: #{tpu_custom_call.1} parent=1 // pred_region
      %499 = dma.done [#allocation4], 32
    $region49: #{tpu_custom_call.1} parent=1 // pred_fallthru
      _
    // Predicated region
    $region50: #{tpu_custom_call.1} parent=1 // pred_check
      _
    $region51: #{tpu_custom_call.1} parent=1 // pred_check_branch
      %501 = sbr.rel (0) target = $region53
    $region52: #{tpu_custom_call.1} parent=1 // pred_region
      _
    $region53: #{tpu_custom_call.1} parent=1 // pred_fallthru
      _
    // Predicated region
    $region54: #{tpu_custom_call.1} parent=1 // pred_check
      _
    $region55: #{tpu_custom_call.1} parent=1 // pred_check_branch
      %503 = sbr.rel (0) target = $region57
    $region56: #{tpu_custom_call.1} parent=1 // pred_region
      %504 = dma.done [#allocation6], 32
    $region57: #{tpu_custom_call.1} parent=1 // pred_fallthru
      _
    %505 = vsyncpa [#allocation4], 1
    %506 = vsyncpa [#allocation6], 1

</llo_original>
